<compile_context>
chip_gen: v7x
topology: tpu7x:2x2x1
jax: 0.10.0
libtpu: 0.0.40
codegen_flags: <defaults>
</compile_context>

<pallas_src>
import jax
import jax.numpy as jnp
from jax.experimental import pallas as pl
from jax.experimental.pallas import tpu as pltpu


def _scaling_kernel(x_ref, a_ref, b_ref, o_ref):
    # x_ref/o_ref: (row_tile, tile_hw); a_ref/b_ref: (row_tile, 1) f32,
    # broadcast along lanes. Single fused multiply-add per element in f32.
    x = x_ref[...].astype(jnp.float32)
    o_ref[...] = (x * a_ref[...] + b_ref[...]).astype(o_ref.dtype)


def _folded_constants():
    # ((x + shift2) / scale2 - shift) / scale  ==  x * a_c + b_c  (per channel)
    shift = jnp.array([0.485, 0.456, 0.406], dtype=jnp.float32)
    scale = jnp.array([0.229, 0.224, 0.225], dtype=jnp.float32)
    shift2 = jnp.array([1.0, 1.0, 1.0], dtype=jnp.float32)
    scale2 = jnp.array([2.0, 2.0, 2.0], dtype=jnp.float32)
    a_c = 1.0 / (scale2 * scale)
    b_c = (shift2 / scale2 - shift) / scale
    return a_c, b_c


def scaling_layer(x, *, max_block_bytes=8 * 1024 * 1024,
                  min_pallas_bytes=1 << 20, force_pallas=False,
                  donate_input=False):
    """x: float NCHW array [N, 3, H, W] -> same shape/dtype."""
    N, C, H, W = x.shape
    assert C == 3, "ScalingLayer buffers are defined for 3 channels"
    HW = H * W
    R = N * C
    dtype = x.dtype
    itemsize = jnp.dtype(dtype).itemsize
    total_bytes = R * HW * itemsize

    a_c, b_c = _folded_constants()

    # Tiny inputs: let XLA fuse the FMA; pallas_call setup would dominate.
    if (not force_pallas) and total_bytes < min_pallas_bytes:
        a4 = a_c.reshape(1, 3, 1, 1)
        b4 = b_c.reshape(1, 3, 1, 1)
        return (x.astype(jnp.float32) * a4 + b4).astype(dtype)

    # --- Row (sublane) tiling: full sublane packing per dtype. ---
    packing = max(1, 4 // itemsize)        # f32 -> 1, bf16 -> 2, int8/fp8 -> 4
    row_base = 8 * packing                 # 8 / 16 / 32 rows per dense vreg
    row_tile = row_base if R >= row_base else R
    grid_r = pl.cdiv(R, row_tile)
    r_pad = grid_r * row_tile

    # --- Lane tiling: byte-based cap, balanced across grid steps. ---
    if HW <= 128:
        tile_hw = HW                       # full-dim block (satisfies layout rule)
        grid_hw = 1
    else:
        cap = max(128, (max_block_bytes // (row_tile * itemsize)) // 128 * 128)
        grid_hw = pl.cdiv(HW, cap)
        tile_hw = pl.cdiv(pl.cdiv(HW, grid_hw), 128) * 128   # balanced, 128-aligned
        grid_hw = pl.cdiv(HW, tile_hw)
        # Megacore (v7x): avoid a collapsed 1-step grid for non-tiny inputs.
        if grid_r * grid_hw == 1 and total_bytes >= (2 << 20) and HW >= 256:
            tile_hw = pl.cdiv(pl.cdiv(HW, 2), 128) * 128
            grid_hw = pl.cdiv(HW, tile_hw)

    # --- Per-row constants (f32): row r of the (N*C, HW) view has channel r % C.
    a_rows = jnp.tile(a_c, N)
    b_rows = jnp.tile(b_c, N)
    if r_pad > R:
        pad = r_pad - R
        a_rows = jnp.concatenate([a_rows, jnp.ones((pad,), jnp.float32)])
        b_rows = jnp.concatenate([b_rows, jnp.zeros((pad,), jnp.float32)])
    a_rows = a_rows.reshape(r_pad, 1)
    b_rows = b_rows.reshape(r_pad, 1)

    x_2d = x.reshape(R, HW)

    # VMEM budget: 2x double-buffered input + 2x output blocks + margin,
    # capped so it fits v7x's 64 MiB physical VMEM (and is plenty on v5e/v6e).
    block_bytes = row_tile * tile_hw * itemsize
    vmem_limit_bytes = int(min(48 << 20, max(16 << 20, 4 * block_bytes + (4 << 20))))

    cost = pl.CostEstimate(
        flops=2 * R * HW,
        transcendentals=0,
        bytes_accessed=2 * R * HW * itemsize + 2 * r_pad * 4,
    )

    out_2d = pl.pallas_call(
        _scaling_kernel,
        out_shape=jax.ShapeDtypeStruct((R, HW), dtype),
        grid_spec=pltpu.PrefetchScalarGridSpec(
            num_scalar_prefetch=0,
            grid=(grid_r, grid_hw),
            in_specs=[
                pl.BlockSpec((row_tile, tile_hw), lambda r, h: (r, h)),
                # Block index constant across h (the fastest grid axis), so
                # Pallas skips re-fetching these tiny vectors between hw steps.
                pl.BlockSpec((row_tile, 1), lambda r, h: (r, 0)),
                pl.BlockSpec((row_tile, 1), lambda r, h: (r, 0)),
            ],
            out_specs=pl.BlockSpec((row_tile, tile_hw), lambda r, h: (r, h)),
        ),
        compiler_params=pltpu.CompilerParams(
            dimension_semantics=("parallel", "parallel"),
            vmem_limit_bytes=vmem_limit_bytes,
        ),
        cost_estimate=cost,
        input_output_aliases=({0: 0} if donate_input else {}),
    )(x_2d, a_rows, b_rows)

    return out_2d.reshape(N, C, H, W)


def scaling_layer_ref(x):
    """Pure-JAX reference mirroring the PyTorch forward exactly."""
    shift = jnp.array([0.485, 0.456, 0.406], dtype=x.dtype).reshape(1, 3, 1, 1)
    scale = jnp.array([0.229, 0.224, 0.225], dtype=x.dtype).reshape(1, 3, 1, 1)
    shift2 = jnp.array([1.0, 1.0, 1.0], dtype=x.dtype).reshape(1, 3, 1, 1)
    scale2 = jnp.array([2.0, 2.0, 2.0], dtype=x.dtype).reshape(1, 3, 1, 1)
    x = (x + shift2) / scale2
    x = (x - shift) / scale
    return x


if __name__ == "__main__":
    key = jax.random.PRNGKey(0)
    # Small NCHW input consistent with the module: batch=2, channels=3, 16x16.
    x = jax.random.uniform(key, (2, 3, 16, 16), dtype=jnp.float32,
                           minval=-1.0, maxval=1.0)

    ref = scaling_layer_ref(x)

    # Pallas path (forced, since the test input is below the fallback threshold).
    out = scaling_layer(x, force_pallas=True)
    out = jax.block_until_ready(out)
    assert out.shape == x.shape and out.dtype == x.dtype
    assert jnp.allclose(out, ref, atol=1e-5, rtol=1e-5)

    # Auto-dispatch path (tiny input -> fused XLA FMA fallback).
    out2 = jax.block_until_ready(scaling_layer(x))
    assert jnp.allclose(out2, ref, atol=1e-5, rtol=1e-5)

    print("KERNEL_OK")
</pallas_src>

<mosaic_0001>
module attributes {stable_mosaic.version = 11 : i64} {
  func.func @_scaling_kernel(%arg0: i32, %arg1: i32, %arg2: memref<6x256xf32, #tpu.memory_space<vmem>>, %arg3: memref<6x1xf32, #tpu.memory_space<vmem>>, %arg4: memref<6x1xf32, #tpu.memory_space<vmem>>, %arg5: memref<6x256xf32, #tpu.memory_space<vmem>>) attributes {dimension_semantics = [#tpu.dimension_semantics<parallel>, #tpu.dimension_semantics<parallel>], iteration_bounds = array<i64: 1, 1>, scalar_prefetch = 0 : i64, scratch_operands = 0 : i64, tpu.core_type = #tpu.core_type<tc>, window_params = [{transform_indices = @transform_0, window_bounds = array<i64: 6, 256>}, {transform_indices = @transform_1, window_bounds = array<i64: 6, 1>}, {transform_indices = @transform_2, window_bounds = array<i64: 6, 1>}, {transform_indices = @transform_3, window_bounds = array<i64: 6, 256>}]} {
    %c0 = arith.constant 0 : index
    %c0_0 = arith.constant 0 : index
    %0 = vector.load %arg2[%c0, %c0_0] : memref<6x256xf32, #tpu.memory_space<vmem>>, vector<6x256xf32>
    %c0_1 = arith.constant 0 : index
    %c0_2 = arith.constant 0 : index
    %1 = vector.load %arg3[%c0_1, %c0_2] : memref<6x1xf32, #tpu.memory_space<vmem>>, vector<6x1xf32>
    %2 = vector.broadcast %1 : vector<6x1xf32> to vector<6x256xf32>
    %3 = arith.mulf %0, %2 : vector<6x256xf32>
    %c0_3 = arith.constant 0 : index
    %c0_4 = arith.constant 0 : index
    %4 = vector.load %arg4[%c0_3, %c0_4] : memref<6x1xf32, #tpu.memory_space<vmem>>, vector<6x1xf32>
    %5 = vector.broadcast %4 : vector<6x1xf32> to vector<6x256xf32>
    %6 = arith.addf %3, %5 : vector<6x256xf32>
    %c0_5 = arith.constant 0 : index
    %c0_6 = arith.constant 0 : index
    %7 = vector.load %arg5[%c0_5, %c0_6] : memref<6x256xf32, #tpu.memory_space<vmem>>, vector<6x256xf32>
    tpu.vector_store %arg5[%c0_5, %c0_6], %6 {strides = array<i32>} : memref<6x256xf32, #tpu.memory_space<vmem>>, vector<6x256xf32>,
    return
  }
  func.func @transform_0(%arg0: i32, %arg1: i32) -> (i32, i32) {
    %c0_i32 = arith.constant 0 : i32
    return %arg0, %arg1 : i32, i32
  }
  func.func @transform_1(%arg0: i32, %arg1: i32) -> (i32, i32) {
    %c0_i32 = arith.constant 0 : i32
    %c0_i32_0 = arith.constant 0 : i32
    return %arg0, %c0_i32 : i32, i32
  }
  func.func @transform_2(%arg0: i32, %arg1: i32) -> (i32, i32) {
    %c0_i32 = arith.constant 0 : i32
    %c0_i32_0 = arith.constant 0 : i32
    return %arg0, %c0_i32 : i32, i32
  }
  func.func @transform_3(%arg0: i32, %arg1: i32) -> (i32, i32) {
    %c0_i32 = arith.constant 0 : i32
    return %arg0, %arg1 : i32, i32
  }
}

</mosaic_0001>

<llo_original>
// kernel: tpu_custom_call.1
$region0: #{tpu_custom_call.1}
  #allocation0 [shape = 'u32[]', space=smem, size = 0x4, offset = 0x4, fixed_abs, tag = 'smem constant byte address 0x4 - core index']
  #allocation1 [shape = 'u32[144,128]{1,0:T(1,128)}', space=vmem, size = 0x12000, scoped, tag = 'internal scratch']
  %s0 = inlined_call_operand.vmem [shape: f32[6,256], index: 0, kind: input, shape index: {}]
  %s1 = inlined_call_operand.vmem [shape: f32[6,1], index: 1, kind: input, shape index: {}]
  %s2 = inlined_call_operand.vmem [shape: f32[6,1], index: 2, kind: input, shape index: {}]
  %s3 = inlined_call_operand.hbm [shape: f32[6,256], index: 3, kind: output, shape index: {}]
  %s4 = sld [smem:[#allocation0]]
  $region22: #{tpu_custom_call.1} parent=0
    _
  %s6 = ssub.s32 1, %s4
  %s7 = scalar_select 0, %s6, %s4
  $region1: #{tpu_custom_call.1} parent=0
    #allocation2 [shape = 'u8[8192]{0}', space=vmem, size = 0x2000, scoped, tag = 'output window, operand 0, single buffered']
    #allocation3 [shape = 's32[1]{0}', space=sflag, size = 0x4, scoped, tag = 'scoped memory for tpu_custom_call.1']
    %8 = vsyncpa [#allocation3], 0
    // Predicated region
    $region2: #{tpu_custom_call.1} parent=1 // pred_check
      _
    $region3: #{tpu_custom_call.1} parent=1 // pred_check_branch
      %10 = sbr.rel (0) target = $region5
    $region4: #{tpu_custom_call.1} parent=1 // pred_region
      _
    $region5: #{tpu_custom_call.1} parent=1 // pred_fallthru
      _
    // Predicated region
    $region6: #{tpu_custom_call.1} parent=1 // pred_check
      _
    $region7: #{tpu_custom_call.1} parent=1 // pred_check_branch
      %12 = sbr.rel (0) target = $region9
    $region8: #{tpu_custom_call.1} parent=1 // pred_region
      _
    $region9: #{tpu_custom_call.1} parent=1 // pred_fallthru
      _
    // Predicated region
    $region10: #{tpu_custom_call.1} parent=1 // pred_check
      _
    $region11: #{tpu_custom_call.1} parent=1 // pred_check_branch
      %14 = sbr.rel (0) target = $region13
    $region12: #{tpu_custom_call.1} parent=1 // pred_region
      _
    $region13: #{tpu_custom_call.1} parent=1 // pred_fallthru
      _
    %v15 = vld [vmem:[%s0] sm:$0x3f]
    %v16 = vld [vmem:[%s0 + $0x8] sm:$0x3f]
    %v17 = vld [vmem:[%s1] sm:$0x3f]
    %19 = vset.pattern.permute.xlu0 0
    %20 = vperm.xlu0 %19, %v17
    %v21 = vpop.permute.xlu0 %20
    %v23 = vmul.f32 %v15, %v21
    %v24 = vmul.f32 %v16, %v21
    %v25 = vld [vmem:[%s2] sm:$0x3f]
    %27 = vset.pattern.permute.xlu0 0
    %28 = vperm.xlu0 %27, %v25
    %v29 = vpop.permute.xlu0 %28
    %v31 = vadd.f32 %v23, %v29
    %v32 = vadd.f32 %v24, %v29
    %33 = vst [vmem:[#allocation2] sm:$0x3f] %v31
    %34 = vst [vmem:[#allocation2 + $0x8] sm:$0x3f] %v32
    // Predicated region
    $region14: #{tpu_custom_call.1} parent=1 // pred_check
      _
    $region15: #{tpu_custom_call.1} parent=1 // pred_check_branch
      %36 = sbr.rel (0) target = $region17
    $region16: #{tpu_custom_call.1} parent=1 // pred_region
      %s38 = ssub.s32 256, 256
      %39 = vsyncadd [#allocation3], %s38
      %s41 = sshll.u32 [#allocation2], 4
      %s42 = int_to_ptr.vmem [resolvable:$true] %s41
      %44 = dma.vmem_to_hbm [thread:$0]  %s42, 256, %s3, [#allocation3]
    $region17: #{tpu_custom_call.1} parent=1 // pred_fallthru
      _
    // Predicated region
    $region18: #{tpu_custom_call.1} parent=1 // pred_check
      _
    $region19: #{tpu_custom_call.1} parent=1 // pred_check_branch
      %46 = sbr.rel (0) target = $region21
    $region20: #{tpu_custom_call.1} parent=1 // pred_region
      %47 = dma.done [#allocation3], 256
    $region21: #{tpu_custom_call.1} parent=1 // pred_fallthru
      _
    %48 = vsyncpa [#allocation3], 1

</llo_original>
